<compile_context>
chip_gen: v6e
topology: v6e:2x2x1
jax: 0.10.0
libtpu: 0.0.40
codegen_flags: <defaults>
</compile_context>

<pallas_src>
import math

import jax
import jax.numpy as jnp
from jax.experimental import pallas as pl
from jax.experimental.pallas import tpu as pltpu


F_PAD = 128   # lane-dense feature width used for every layer's intermediates
LANE = 128


def rgcn_layer_kernel(a_ref, x_ref, w_ref, b_ref, o_ref, h_ref):
    """One grid step == one R-GCN layer (grid axis = layer index).

    a_ref : (N, R_pad*N) bf16  a[i, r*N + j] = #edges j->i of relation r;
                               slot r == R is the identity (folded self-loop),
                               slots r > R are zero padding.
    x_ref : (N, F)       f32   zero-padded input node features (read at l==0).
    w_ref : (F, R_pad*F) bf16  this layer's concatenated weights,
                               w[:, r*F:(r+1)*F] = W_r (slot R = W_self).
    b_ref : (1, F)       f32   this layer's bias.
    o_ref : (N, F)       f32   final output slab (written on the last layer).
    h_ref : (N, F)       f32   VMEM scratch carrying h across layers.
    """
    l = pl.program_id(0)

    @pl.when(l == 0)
    def _():
        h_ref[...] = x_ref[...]

    N, F = h_ref.shape
    R_pad = a_ref.shape[1] // N

    hb = h_ref[...].astype(jnp.bfloat16)                         # (N, F)

    # All relation transforms (incl. folded self-loop) as ONE wide MXU matmul.
    xw = jnp.dot(hb, w_ref[...],
                 preferred_element_type=jnp.float32)             # (N, R_pad*F)
    xw = xw.astype(jnp.bfloat16)

    # Tile-aligned lane slices -> sublane stack; rows ordered (r, n), matching
    # a_ref's (relation-outer) column layout.  No transpose, no odd reshape.
    xw_stacked = jnp.concatenate(
        [xw[:, r * F:(r + 1) * F] for r in range(R_pad)], axis=0)  # (R_pad*N, F)

    # Aggregate over relations + neighbors (+ self) in one K = R_pad*N matmul.
    msg = jnp.dot(a_ref[...], xw_stacked,
                  preferred_element_type=jnp.float32)            # (N, F) f32

    h_new = jnp.maximum(msg + b_ref[...], 0.0)                   # bias + ReLU
    h_ref[...] = h_new

    @pl.when(l == pl.num_programs(0) - 1)
    def _():
        o_ref[...] = h_new


def rgcn_forward(A, feat, params):
    """A: (R, N, N) dense per-relation adjacency, A[r, i, j] = #edges j->i.
    params: list over layers of (W (R,din,dout), W_self (din,dout), b (dout,))."""
    R, N, _ = A.shape
    L = len(params)
    F = F_PAD
    out_feat = params[-1][1].shape[1]

    # Fold the self-loop as relation slot R, then pad the relation count so the
    # aggregation K = R_pad*N is a multiple of 128 (lane-dense A, full MXU K).
    r_mult = LANE // math.gcd(N, LANE)
    R_pad = ((R + 1 + r_mult - 1) // r_mult) * r_mult
    K = R_pad * N

    A_ext = jnp.zeros((R_pad, N, N), jnp.float32)
    A_ext = A_ext.at[:R].set(A)
    A_ext = A_ext.at[R].set(jnp.eye(N, dtype=jnp.float32))        # self-loop
    # a_flat[i, r*N + j] = A_ext[r, i, j]  (relation-outer source ordering).
    a_flat = A_ext.transpose(1, 0, 2).reshape(N, K).astype(jnp.bfloat16)

    # Per-layer concatenated weights / bias, zero-padded to lane-dense F.
    # (Zero pads are exactly inert through matmul, bias add and ReLU.)
    w_cat = jnp.zeros((L, F, R_pad * F), jnp.float32)
    b_all = jnp.zeros((L, 1, F), jnp.float32)
    for l, (W, W_self, b) in enumerate(params):
        din, dout = W_self.shape
        for r in range(R):
            w_cat = w_cat.at[l, :din, r * F:r * F + dout].set(W[r])
        w_cat = w_cat.at[l, :din, R * F:R * F + dout].set(W_self)
        b_all = b_all.at[l, 0, :dout].set(b)
    w_cat = w_cat.astype(jnp.bfloat16)

    x = jnp.zeros((N, F), jnp.float32).at[:, :feat.shape[1]].set(feat)

    out = pl.pallas_call(
        rgcn_layer_kernel,
        out_shape=jax.ShapeDtypeStruct((N, F), jnp.float32),
        grid_spec=pltpu.PrefetchScalarGridSpec(
            num_scalar_prefetch=0,
            grid=(L,),                                      # layer axis: streams
            in_specs=[                                      # next layer's weights
                pl.BlockSpec((N, K), lambda l: (0, 0)),     # under current matmuls
                pl.BlockSpec((N, F), lambda l: (0, 0)),
                pl.BlockSpec((None, F, R_pad * F), lambda l: (l, 0, 0)),
                pl.BlockSpec((None, 1, F), lambda l: (l, 0, 0)),
            ],
            out_specs=pl.BlockSpec((N, F), lambda l: (0, 0)),
            scratch_shapes=[pltpu.VMEM((N, F), jnp.float32)],
        ),
        compiler_params=pltpu.CompilerParams(
            dimension_semantics=("arbitrary",)),
    )(a_flat, x, w_cat, b_all)

    return out[:, :out_feat]


# ----------------------------- references ----------------------------------
def ref_forward_f32(A, feat, params):
    h = feat
    for (W, W_self, b) in params:
        out = h @ W_self + b
        for r in range(A.shape[0]):
            out = out + A[r] @ (h @ W[r])
        h = jax.nn.relu(out)
    return h


def ref_forward_mixed(A, feat, params):
    """Mirror of the kernel's bf16-operand / f32-accumulation arithmetic,
    incl. the bf16 re-rounding of h@W before aggregation and the folded
    identity self-loop."""
    bf = jnp.bfloat16
    N = feat.shape[0]
    eye = jnp.eye(N, dtype=jnp.float32)
    h = feat
    for (W, W_self, b) in params:
        hb = h.astype(bf)
        out = jnp.zeros((N, W_self.shape[1]), jnp.float32) + b
        mats = [W[r] for r in range(W.shape[0])] + [W_self]
        adjs = [A[r] for r in range(W.shape[0])] + [eye]
        for Wr, Ar in zip(mats, adjs):
            xw = jnp.dot(hb, Wr.astype(bf), preferred_element_type=jnp.float32)
            out = out + jnp.dot(Ar.astype(bf), xw.astype(bf),
                                preferred_element_type=jnp.float32)
        h = jax.nn.relu(out)
    return h


if __name__ == "__main__":
    # Model(in_feat=8, h_feat=32, out_feat=16, num_rel=4, num_layer=1)
    in_feat, h_feat, out_feat = 8, 32, 16
    num_rel, num_layer = 4, 1
    N, E = 16, 40  # nodes, edges

    key = jax.random.PRNGKey(0)
    k_feat, k_src, k_dst, k_et, k_w = jax.random.split(key, 5)

    feat = jax.random.normal(k_feat, (N, in_feat), jnp.float32)
    src = jax.random.randint(k_src, (E,), 0, N)
    dst = jax.random.randint(k_dst, (E,), 0, N)
    etype = jax.random.randint(k_et, (E,), 0, num_rel)

    # Dense per-relation adjacency A[r, i, j] = #edges j->i of relation r.
    A = jnp.zeros((num_rel, N, N), jnp.float32).at[etype, dst, src].add(1.0)

    # Layer dims: in->h, num_layer x (h->h), h->out  (matches the Model's
    # layer-count convention: num_layer + 2 RelGraphConv layers).
    layer_dims = [(in_feat, h_feat)] + [(h_feat, h_feat)] * num_layer + [(h_feat, out_feat)]
    params = []
    wkeys = jax.random.split(k_w, len(layer_dims))
    for kk, (din, dout) in zip(wkeys, layer_dims):
        k1, k2, k3 = jax.random.split(kk, 3)
        scale = (2.0 / (din + dout)) ** 0.5
        W = scale * jax.random.normal(k1, (num_rel, din, dout), jnp.float32)
        W_self = scale * jax.random.normal(k2, (din, dout), jnp.float32)
        b = 0.01 * jax.random.normal(k3, (dout,), jnp.float32)
        params.append((W, W_self, b))

    out = rgcn_forward(A, feat, params)
    out = jax.block_until_ready(out)
    assert out.shape == (N, out_feat)

    ref_mixed = ref_forward_mixed(A, feat, params)   # same bf16/f32 arithmetic
    ref_full = ref_forward_f32(A, feat, params)      # full-f32 sanity check
    assert jnp.allclose(out, ref_mixed, atol=1e-3, rtol=1e-3), \
        "mismatch vs mixed-precision reference"
    assert jnp.allclose(out, ref_full, atol=1e-1, rtol=1e-1), \
        "mismatch vs float32 reference"

    print("KERNEL_OK")
</pallas_src>

<mosaic_0001>
module attributes {stable_mosaic.version = 11 : i64} {
  func.func @rgcn_layer_kernel(%arg0: i32, %arg1: memref<16x128xbf16, #tpu.memory_space<vmem>>, %arg2: memref<16x128xf32, #tpu.memory_space<vmem>>, %arg3: memref<1x128x1024xbf16, #tpu.memory_space<vmem>>, %arg4: memref<1x1x128xf32, #tpu.memory_space<vmem>>, %arg5: memref<16x128xf32, #tpu.memory_space<vmem>>, %arg6: memref<16x128xf32, #tpu.memory_space<vmem>>) attributes {dimension_semantics = [#tpu.dimension_semantics<arbitrary>], iteration_bounds = array<i64: 3>, scalar_prefetch = 0 : i64, scratch_operands = 1 : i64, tpu.core_type = #tpu.core_type<tc>, window_params = [{pipeline_mode = #tpu.pipeline_mode<synchronous>, transform_indices = @transform_0, window_bounds = array<i64: 16, 128>}, {pipeline_mode = #tpu.pipeline_mode<synchronous>, transform_indices = @transform_1, window_bounds = array<i64: 16, 128>}, {transform_indices = @transform_2, window_bounds = array<i64: 1, 128, 1024>}, {transform_indices = @transform_3, window_bounds = array<i64: 1, 1, 128>}, {pipeline_mode = #tpu.pipeline_mode<synchronous>, transform_indices = @transform_4, window_bounds = array<i64: 16, 128>}]} {
    %c0_i32 = arith.constant 0 : i32
    %0 = arith.cmpi eq, %arg0, %c0_i32 : i32
    %1 = arith.extui %0 : i1 to i32
    %c0_i32_0 = arith.constant 0 : i32
    %2 = arith.cmpi ne, %1, %c0_i32_0 : i32
    scf.if %2 {
      %c0_15 = arith.constant 0 : index
      %c0_16 = arith.constant 0 : index
      %30 = vector.load %arg2[%c0_15, %c0_16] : memref<16x128xf32, #tpu.memory_space<vmem>>, vector<16x128xf32>
      %c0_17 = arith.constant 0 : index
      %c0_18 = arith.constant 0 : index
      %31 = vector.load %arg6[%c0_17, %c0_18] : memref<16x128xf32, #tpu.memory_space<vmem>>, vector<16x128xf32>
      tpu.vector_store %arg6[%c0_17, %c0_18], %30 {strides = array<i32>} : memref<16x128xf32, #tpu.memory_space<vmem>>, vector<16x128xf32>,
    } else {
    }
    %c0 = arith.constant 0 : index
    %c0_1 = arith.constant 0 : index
    %3 = vector.load %arg6[%c0, %c0_1] : memref<16x128xf32, #tpu.memory_space<vmem>>, vector<16x128xf32>
    %4 = arith.truncf %3 : vector<16x128xf32> to vector<16x128xbf16>
    %c0_2 = arith.constant 0 : index
    %c0_3 = arith.constant 0 : index
    %c0_4 = arith.constant 0 : index
    %5 = vector.load %arg3[%c0_2, %c0_3, %c0_4] : memref<1x128x1024xbf16, #tpu.memory_space<vmem>>, vector<1x128x1024xbf16>
    %6 = vector.shape_cast %5 : vector<1x128x1024xbf16> to vector<128x1024xbf16>
    %cst = arith.constant dense<0.000000e+00> : vector<16x1024xf32>
    %7 = tpu.matmul %4, %6, %cst {dimension_numbers = #tpu.dot_dimension_numbers<[1], [0], [0], [1], [0, 0, 1, 1], [], []>} : vector<16x128xbf16>, vector<128x1024xbf16>, vector<16x1024xf32> -> vector<16x1024xf32>
    %8 = arith.truncf %7 : vector<16x1024xf32> to vector<16x1024xbf16>
    %9 = vector.extract_strided_slice %8 {offsets = [0, 0], sizes = [16, 128], strides = [1, 1]} : vector<16x1024xbf16> to vector<16x128xbf16>
    %10 = vector.extract_strided_slice %8 {offsets = [0, 128], sizes = [16, 128], strides = [1, 1]} : vector<16x1024xbf16> to vector<16x128xbf16>
    %11 = vector.extract_strided_slice %8 {offsets = [0, 256], sizes = [16, 128], strides = [1, 1]} : vector<16x1024xbf16> to vector<16x128xbf16>
    %12 = vector.extract_strided_slice %8 {offsets = [0, 384], sizes = [16, 128], strides = [1, 1]} : vector<16x1024xbf16> to vector<16x128xbf16>
    %13 = vector.extract_strided_slice %8 {offsets = [0, 512], sizes = [16, 128], strides = [1, 1]} : vector<16x1024xbf16> to vector<16x128xbf16>
    %14 = vector.extract_strided_slice %8 {offsets = [0, 640], sizes = [16, 128], strides = [1, 1]} : vector<16x1024xbf16> to vector<16x128xbf16>
    %15 = vector.extract_strided_slice %8 {offsets = [0, 768], sizes = [16, 128], strides = [1, 1]} : vector<16x1024xbf16> to vector<16x128xbf16>
    %16 = vector.extract_strided_slice %8 {offsets = [0, 896], sizes = [16, 128], strides = [1, 1]} : vector<16x1024xbf16> to vector<16x128xbf16>
    %17 = tpu.concatenate %9, %10, %11, %12, %13, %14, %15, %16 in 0 : vector<16x128xbf16>, vector<16x128xbf16>, vector<16x128xbf16>, vector<16x128xbf16>, vector<16x128xbf16>, vector<16x128xbf16>, vector<16x128xbf16>, vector<16x128xbf16> -> vector<128x128xbf16>
    %c0_5 = arith.constant 0 : index
    %c0_6 = arith.constant 0 : index
    %18 = vector.load %arg1[%c0_5, %c0_6] : memref<16x128xbf16, #tpu.memory_space<vmem>>, vector<16x128xbf16>
    %cst_7 = arith.constant dense<0.000000e+00> : vector<16x128xf32>
    %19 = tpu.matmul %18, %17, %cst_7 {dimension_numbers = #tpu.dot_dimension_numbers<[1], [0], [0], [1], [0, 0, 1, 1], [], []>} : vector<16x128xbf16>, vector<128x128xbf16>, vector<16x128xf32> -> vector<16x128xf32>
    %c0_8 = arith.constant 0 : index
    %c0_9 = arith.constant 0 : index
    %c0_10 = arith.constant 0 : index
    %20 = vector.load %arg4[%c0_8, %c0_9, %c0_10] : memref<1x1x128xf32, #tpu.memory_space<vmem>>, vector<1x1x128xf32>
    %21 = vector.shape_cast %20 : vector<1x1x128xf32> to vector<1x128xf32>
    %22 = vector.broadcast %21 : vector<1x128xf32> to vector<16x128xf32>
    %23 = arith.addf %19, %22 : vector<16x128xf32>
    %cst_11 = arith.constant 0.000000e+00 : f32
    %24 = vector.broadcast %cst_11 : f32 to vector<16x128xf32>
    %25 = arith.maximumf %23, %24 : vector<16x128xf32>
    %c0_12 = arith.constant 0 : index
    %c0_13 = arith.constant 0 : index
    %26 = vector.load %arg6[%c0_12, %c0_13] : memref<16x128xf32, #tpu.memory_space<vmem>>, vector<16x128xf32>
    tpu.vector_store %arg6[%c0_12, %c0_13], %25 {strides = array<i32>} : memref<16x128xf32, #tpu.memory_space<vmem>>, vector<16x128xf32>,
    %c2_i32 = arith.constant 2 : i32
    %27 = arith.cmpi eq, %arg0, %c2_i32 : i32
    %28 = arith.extui %27 : i1 to i32
    %c0_i32_14 = arith.constant 0 : i32
    %29 = arith.cmpi ne, %28, %c0_i32_14 : i32
    scf.if %29 {
      %c0_15 = arith.constant 0 : index
      %c0_16 = arith.constant 0 : index
      %30 = vector.load %arg5[%c0_15, %c0_16] : memref<16x128xf32, #tpu.memory_space<vmem>>, vector<16x128xf32>
      tpu.vector_store %arg5[%c0_15, %c0_16], %25 {strides = array<i32>} : memref<16x128xf32, #tpu.memory_space<vmem>>, vector<16x128xf32>,
    } else {
    }
    return
  }
  func.func @transform_0(%arg0: i32) -> (i32, i32) {
    %c0_i32 = arith.constant 0 : i32
    %c0_i32_0 = arith.constant 0 : i32
    %c0_i32_1 = arith.constant 0 : i32
    return %c0_i32, %c0_i32_0 : i32, i32
  }
  func.func @transform_1(%arg0: i32) -> (i32, i32) {
    %c0_i32 = arith.constant 0 : i32
    %c0_i32_0 = arith.constant 0 : i32
    %c0_i32_1 = arith.constant 0 : i32
    return %c0_i32, %c0_i32_0 : i32, i32
  }
  func.func @transform_2(%arg0: i32) -> (i32, i32, i32) {
    %c0_i32 = arith.constant 0 : i32
    %c0_i32_0 = arith.constant 0 : i32
    %c0_i32_1 = arith.constant 0 : i32
    return %arg0, %c0_i32, %c0_i32_0 : i32, i32, i32
  }
  func.func @transform_3(%arg0: i32) -> (i32, i32, i32) {
    %c0_i32 = arith.constant 0 : i32
    %c0_i32_0 = arith.constant 0 : i32
    %c0_i32_1 = arith.constant 0 : i32
    return %arg0, %c0_i32, %c0_i32_0 : i32, i32, i32
  }
  func.func @transform_4(%arg0: i32) -> (i32, i32) {
    %c0_i32 = arith.constant 0 : i32
    %c0_i32_0 = arith.constant 0 : i32
    %c0_i32_1 = arith.constant 0 : i32
    return %c0_i32, %c0_i32_0 : i32, i32
  }
}

</mosaic_0001>

<llo_original>
// kernel: tpu_custom_call.1
$region0: #{tpu_custom_call.1}
  #allocation0 [shape = 'u32[]', space=smem, size = 0x4, offset = 0x4, fixed_abs, tag = 'smem constant byte address 0x4 - core index']
  #allocation1 [shape = 'u32[144,128]{1,0:T(1,128)}', space=vmem, size = 0x12000, scoped, tag = 'internal scratch']
  #allocation2 [shape = 'f32[16,128]{1,0:T(8,128)}', space=vmem, size = 0x2000, scoped, tag = 'scratch operand']
  %s0 = inlined_call_operand.hbm [shape: bf16[16,128], index: 0, kind: input, shape index: {}]
  %s1 = inlined_call_operand.hbm [shape: f32[16,128], index: 1, kind: input, shape index: {}]
  %s2 = inlined_call_operand.hbm [shape: bf16[3,128,1024], index: 2, kind: input, shape index: {}]
  %s3 = inlined_call_operand.vmem [shape: f32[3,1,128], index: 3, kind: input, shape index: {}]
  %s4 = inlined_call_operand.hbm [shape: f32[16,128], index: 4, kind: output, shape index: {}]
  %s5 = sld [smem:[#allocation0]]
  $region69: #{tpu_custom_call.1} parent=0
    _
  %s7 = ssub.s32 1, %s5
  %s8 = scalar_select 0, %s7, %s5
  $region1: #{tpu_custom_call.1} parent=0
    #allocation3 [shape = 'u8[4096]{0}', space=vmem, size = 0x1000, scoped, tag = 'input window, operand 0, single buffered']
    #allocation4 [shape = 's32[2]{0}', space=sflag, size = 0x8, scoped, tag = 'scoped memory for tpu_custom_call.1']
    #allocation5 [shape = 's32[2]{0}', space=sflag, size = 0x8, scoped, tag = 'scoped memory for tpu_custom_call.1']
    #allocation6 [shape = 'u8[8192]{0}', space=vmem, size = 0x2000, scoped, tag = 'input window, operand 1, single buffered']
    #allocation7 [shape = 's32[1]{0}', space=sflag, size = 0x4, scoped, tag = 'scoped memory for tpu_custom_call.1']
    #allocation8 [shape = 'u8[524288]{0}', space=vmem, size = 0x80000, scoped, tag = 'input window, operand 2']
    #allocation9 [shape = 'u8[8192]{0}', space=vmem, size = 0x2000, scoped, tag = 'output window, operand 0, single buffered']
    %9 = vsyncpa [#allocation4], 0
    %10 = vsyncpa [#allocation7], 0
    %11 = vsyncpa [#allocation5], 0
    loop: start=0, step=1, limit=5
    $region2: #{tpu_custom_call.1} parent=1 // loop_pre_header
      _
    $region3: #{tpu_custom_call.1} parent=1 // loop_header
      %s13 = sphi 0, %s17
      %p14 = scmp.ge.s32.totalorder %s13, 5
      %s21 = sphi 0, %s21
      %s23 = sphi 0, %s21
      %s24 = sphi 0, %s23
      %s38 = sphi 0, %s24
      %s42 = sphi 0, %s42
      %s44 = sphi 0, %s42
      %s45 = sphi 0, %s44
      %s59 = sphi 0, %s45
      %s65 = sphi 0, %s67
      %s68 = sphi 0, %s65
      %s69 = sphi 0, %s68
      %s85 = sphi 0, %s69
      %s91 = sphi 0, %s93
      %s94 = sphi 0, %s91
      %s95 = sphi 0, %s94
      %s111 = sphi 0, %s95
      %s115 = sphi 0, %s115
      %s117 = sphi 0, %s115
      %s118 = sphi 0, %s117
      %s132 = sphi 0, %s118
    $region4: #{tpu_custom_call.1} parent=1 // loop_header_branch
      %16 = sbr.rel (%p14) target = $region8
    $region5: #{tpu_custom_call.1} parent=1 // loop_body
      %s18 = ssub.s32 %s13, 1
      %s19 = ssub.s32 %s13, 2
      %s20 = sadd.s32 %s13, 1
      %s22 = sadd.s32 %s21, 1
      %p25 = scmp.eq.s32.totalorder %s13, 2
      %p26 = scmp.ne.s32.totalorder %s21, %s23
      %p27 = scmp.eq.s32.totalorder %s13, 0
      %p28 = por %p26, %p27
      %p29 = scmp.ne.s32.totalorder %s21, %s23
      %p30 = scmp.eq.s32.totalorder %s18, 2
      %p31 = por %p29, %p30
      %p32 = scmp.ne.s32.totalorder %s23, %s24
      %p33 = scmp.eq.s32.totalorder %s18, 0
      %p34 = por %p32, %p33
      %p35 = scmp.ne.s32.totalorder %s23, %s24
      %p36 = scmp.eq.s32.totalorder %s19, 2
      %p37 = por %p35, %p36
      %p39 = scmp.ne.s32.totalorder %s24, %s38
      %p40 = scmp.eq.s32.totalorder %s19, 0
      %p41 = por %p39, %p40
      %s43 = sadd.s32 %s42, 1
      %p46 = scmp.eq.s32.totalorder %s13, 2
      %p47 = scmp.ne.s32.totalorder %s42, %s44
      %p48 = scmp.eq.s32.totalorder %s13, 0
      %p49 = por %p47, %p48
      %p50 = scmp.ne.s32.totalorder %s42, %s44
      %p51 = scmp.eq.s32.totalorder %s18, 2
      %p52 = por %p50, %p51
      %p53 = scmp.ne.s32.totalorder %s44, %s45
      %p54 = scmp.eq.s32.totalorder %s18, 0
      %p55 = por %p53, %p54
      %p56 = scmp.ne.s32.totalorder %s44, %s45
      %p57 = scmp.eq.s32.totalorder %s19, 2
      %p58 = por %p56, %p57
      %p60 = scmp.ne.s32.totalorder %s45, %s59
      %p61 = scmp.eq.s32.totalorder %s19, 0
      %p62 = por %p60, %p61
      %s63 = ssub.s32 %s13, %s20
      %p64 = scmp.eq.s32.totalorder %s63, 0
      %s66 = sadd.s32 %s65, 1
      %s67 = scalar_select %p64, %s65, %s66
      %p70 = pneg %p64
      %p71 = scmp.eq.s32.totalorder %s13, 2
      %p72 = por %p70, %p71
      %p73 = scmp.ne.s32.totalorder %s65, %s68
      %p74 = scmp.eq.s32.totalorder %s13, 0
      %p75 = por %p73, %p74
      %p76 = scmp.ne.s32.totalorder %s65, %s68
      %p77 = scmp.eq.s32.totalorder %s18, 2
      %p78 = por %p76, %p77
      %p79 = scmp.ne.s32.totalorder %s68, %s69
      %p80 = scmp.eq.s32.totalorder %s18, 0
      %p81 = por %p79, %p80
      %p82 = scmp.ne.s32.totalorder %s68, %s69
      %p83 = scmp.eq.s32.totalorder %s19, 2
      %p84 = por %p82, %p83
      %p86 = scmp.ne.s32.totalorder %s69, %s85
      %p87 = scmp.eq.s32.totalorder %s19, 0
      %p88 = por %p86, %p87
      %s89 = ssub.s32 %s13, %s20
      %p90 = scmp.eq.s32.totalorder %s89, 0
      %s92 = sadd.s32 %s91, 1
      %s93 = scalar_select %p90, %s91, %s92
      %p96 = pneg %p90
      %p97 = scmp.eq.s32.totalorder %s13, 2
      %p98 = por %p96, %p97
      %p99 = scmp.ne.s32.totalorder %s91, %s94
      %p100 = scmp.eq.s32.totalorder %s13, 0
      %p101 = por %p99, %p100
      %p102 = scmp.ne.s32.totalorder %s91, %s94
      %p103 = scmp.eq.s32.totalorder %s18, 2
      %p104 = por %p102, %p103
      %p105 = scmp.ne.s32.totalorder %s94, %s95
      %p106 = scmp.eq.s32.totalorder %s18, 0
      %p107 = por %p105, %p106
      %p108 = scmp.ne.s32.totalorder %s94, %s95
      %p109 = scmp.eq.s32.totalorder %s19, 2
      %p110 = por %p108, %p109
      %p112 = scmp.ne.s32.totalorder %s95, %s111
      %p113 = scmp.eq.s32.totalorder %s19, 0
      %p114 = por %p112, %p113
      %s116 = sadd.s32 %s115, 1
      %p119 = scmp.eq.s32.totalorder %s13, 2
      %p120 = scmp.ne.s32.totalorder %s115, %s117
      %p121 = scmp.eq.s32.totalorder %s13, 0
      %p122 = por %p120, %p121
      %p123 = scmp.ne.s32.totalorder %s115, %s117
      %p124 = scmp.eq.s32.totalorder %s18, 2
      %p125 = por %p123, %p124
      %p126 = scmp.ne.s32.totalorder %s117, %s118
      %p127 = scmp.eq.s32.totalorder %s18, 0
      %p128 = por %p126, %p127
      %p129 = scmp.ne.s32.totalorder %s117, %s118
      %p130 = scmp.eq.s32.totalorder %s19, 2
      %p131 = por %p129, %p130
      %p133 = scmp.ne.s32.totalorder %s118, %s132
      %p134 = scmp.eq.s32.totalorder %s19, 0
      %p135 = por %p133, %p134
      %p136 = scmp.le.s32.totalorder 1, %s13
      %p137 = scmp.lt.s32.totalorder %s13, 4
      %p138 = pnand %p136, %p137
      %p139 = pneg %p138
      // Predicated region
      $region9: #{tpu_custom_call.1} parent=5 // pred_check
        _
      $region10: #{tpu_custom_call.1} parent=5 // pred_check_branch
        %141 = sbr.rel (%p138) target = $region12
      $region11: #{tpu_custom_call.1} parent=5 // pred_region
        %s142 = ssub.s32 %s13, 1
        // Predicated region
        $region13: #{tpu_custom_call.1} parent=11 // pred_check
          %p143 = pneg %p34
        $region14: #{tpu_custom_call.1} parent=11 // pred_check_branch
          %145 = sbr.rel (%p143) target = $region16
        $region15: #{tpu_custom_call.1} parent=11 // pred_region
          %s147 = ssub.s32 128, 128
          %148 = vsyncadd [#allocation4], %s147
          %s149 = sshll.u32 [#allocation3], 4
          %s150 = int_to_ptr.vmem [resolvable:$true] %s149
          %155 = dma.hbm_to_vmem [thread:$0]  %s0, 128, %s150, [#allocation4], 64, 64, 4
        $region16: #{tpu_custom_call.1} parent=11 // pred_fallthru
          _
        // Predicated region
        $region17: #{tpu_custom_call.1} parent=11 // pred_check
          %p156 = pneg %p55
        $region18: #{tpu_custom_call.1} parent=11 // pred_check_branch
          %158 = sbr.rel (%p156) target = $region20
        $region19: #{tpu_custom_call.1} parent=11 // pred_region
          %s160 = ssub.s32 256, 256
          %161 = vsyncadd [#allocation7], %s160
          %s162 = sshll.u32 [#allocation6], 4
          %s163 = int_to_ptr.vmem [resolvable:$true] %s162
          %168 = dma.hbm_to_vmem [thread:$0]  %s1, 256, %s163, [#allocation7], 128, 128, 8
        $region20: #{tpu_custom_call.1} parent=11 // pred_fallthru
          _
      $region12: #{tpu_custom_call.1} parent=5 // pred_fallthru
        _
      %p169 = scmp.lt.s32.totalorder %s13, 3
      // Predicated region
      $region21: #{tpu_custom_call.1} parent=5 // pred_check
        %p170 = pneg %p169
      $region22: #{tpu_custom_call.1} parent=5 // pred_check_branch
        %172 = sbr.rel (%p170) target = $region24
      $region23: #{tpu_custom_call.1} parent=5 // pred_region
        // Predicated region
        $region25: #{tpu_custom_call.1} parent=23 // pred_check
          %p173 = pneg %p75
        $region26: #{tpu_custom_call.1} parent=23 // pred_check_branch
          %175 = sbr.rel (%p173) target = $region28
        $region27: #{tpu_custom_call.1} parent=23 // pred_region
          %s176 = sand.u32 %s13, 1
          %s177 = scalar_lea.sflag [#allocation4], %s176
          %s178 = sand.u32 %s65, 1
          %s179 = smul.addr %s178, 512
          %s180 = scalar_lea.vmem [#allocation8], %s179
          %s182 = ssub.s32 8192, 8192
          %183 = vsyncadd %s177, %s182
          %s184 = smul.addr %s13, 128
          %s185 = smul.addr %s184, 64
          %s186 = scalar_lea.hbm %s2, %s185
          %s187 = sshll.u32 %s180, 4
          %s188 = int_to_ptr.vmem [resolvable:$true] %s187
          %193 = dma.hbm_to_vmem [thread:$0]  %s186, 8192, %s188, %s177, 512, 512, 32
        $region28: #{tpu_custom_call.1} parent=23 // pred_fallthru
          _
        // Predicated region
        $region29: #{tpu_custom_call.1} parent=23 // pred_check
          %p194 = pneg %p101
        $region30: #{tpu_custom_call.1} parent=23 // pred_check_branch
          %196 = sbr.rel (%p194) target = $region32
        $region31: #{tpu_custom_call.1} parent=23 // pred_region
          %p197 = scmp.lt.s32.totalorder %s13, 2
          %s198 = scalar_select %p197, %s13, 2
          %s199 = scalar_lea.vmem %s3, %s198
        $region32: #{tpu_custom_call.1} parent=23 // pred_fallthru
          _
      $region24: #{tpu_custom_call.1} parent=5 // pred_fallthru
        _
      %p200 = scmp.le.s32.totalorder 1, %s13
      %p201 = scmp.lt.s32.totalorder %s13, 4
      %p202 = pnand %p200, %p201
      %p203 = pneg %p202
      // Predicated region
      $region33: #{tpu_custom_call.1} parent=5 // pred_check
        _
      $region34: #{tpu_custom_call.1} parent=5 // pred_check_branch
        %205 = sbr.rel (%p202) target = $region36
      $region35: #{tpu_custom_call.1} parent=5 // pred_region
        %s206 = ssub.s32 %s13, 1
        // Predicated region
        $region37: #{tpu_custom_call.1} parent=35 // pred_check
          %p207 = pneg %p34
        $region38: #{tpu_custom_call.1} parent=35 // pred_check_branch
          %209 = sbr.rel (%p207) target = $region40
        $region39: #{tpu_custom_call.1} parent=35 // pred_region
          %210 = dma.done [#allocation4], 128
        $region40: #{tpu_custom_call.1} parent=35 // pred_fallthru
          _
        // Predicated region
        $region41: #{tpu_custom_call.1} parent=35 // pred_check
          %p211 = pneg %p55
        $region42: #{tpu_custom_call.1} parent=35 // pred_check_branch
          %213 = sbr.rel (%p211) target = $region44
        $region43: #{tpu_custom_call.1} parent=35 // pred_region
          %214 = dma.done [#allocation7], 256
        $region44: #{tpu_custom_call.1} parent=35 // pred_fallthru
          _
        %s215 = sand.u32 %s18, 1
        %s216 = scalar_lea.sflag [#allocation4], %s215
        %s217 = sand.u32 %s68, 1
        %s218 = smul.addr %s217, 512
        %s219 = scalar_lea.vmem [#allocation8], %s218
        // Predicated region
        $region45: #{tpu_custom_call.1} parent=35 // pred_check
          %p220 = pneg %p81
        $region46: #{tpu_custom_call.1} parent=35 // pred_check_branch
          %222 = sbr.rel (%p220) target = $region48
        $region47: #{tpu_custom_call.1} parent=35 // pred_region
          %223 = dma.done %s216, 8192
        $region48: #{tpu_custom_call.1} parent=35 // pred_fallthru
          _
        %p224 = pneg %p34
        %p225 = pneg %p31
        %p226 = pneg %p55
        %p227 = pneg %p52
        %s228 = sand.u32 %s18, 1
        %s229 = scalar_lea.sflag [#allocation4], %s228
        %s230 = sand.u32 %s68, 1
        %s231 = smul.addr %s230, 512
        %s232 = scalar_lea.vmem [#allocation8], %s231
        %p233 = pneg %p81
        %p234 = pneg %p78
        %p235 = scmp.lt.s32.totalorder %s18, 2
        %s236 = scalar_select %p235, %s18, 2
        %s237 = scalar_lea.vmem %s3, %s236
        %p238 = pneg %p107
        %p239 = pneg %p104
        %p240 = pneg %p128
        %p241 = pneg %p125
        %p242 = scmp.lt.s32.totalorder %s18, 2
        %s243 = scalar_select %p242, %s18, 2
        %s244 = scalar_lea.vmem %s3, %s243
        %p246 = scmp.eq.s32.totalorder %s18, 0
        // Predicated region
        $region49: #{tpu_custom_call.1} parent=35 // pred_check
          %p247 = pneg %p246
        $region50: #{tpu_custom_call.1} parent=35 // pred_check_branch
          %249 = sbr.rel (%p247) target = $region52
        $region51: #{tpu_custom_call.1} parent=35 // pred_region
          %v250 = vld [vmem:[#allocation6] sm:$0xff]
          %v251 = vld [vmem:[#allocation6 + $0x8] sm:$0xff]
          %252 = vst [vmem:[#allocation2] sm:$0xff] %v250
          %253 = vst [vmem:[#allocation2 + $0x8] sm:$0xff] %v251
        $region52: #{tpu_custom_call.1} parent=35 // pred_fallthru
          _
        %v254 = vld [vmem:[#allocation2] sm:$0xff]
        %v255 = vld [vmem:[#allocation2 + $0x8] sm:$0xff]
        %v256 = vpack.c.bf16 %v255, %v254
        %v257 = vld [vmem:[%s219] sm:$0xff]
        %v258 = vld [vmem:[%s219 + $0x8] sm:$0xff]
        %v259 = vld [vmem:[%s219 + $0x10] sm:$0xff]
        %v260 = vld [vmem:[%s219 + $0x18] sm:$0xff]
        %v261 = vld [vmem:[%s219 + $0x20] sm:$0xff]
        %v262 = vld [vmem:[%s219 + $0x28] sm:$0xff]
        %v263 = vld [vmem:[%s219 + $0x30] sm:$0xff]
        %v264 = vld [vmem:[%s219 + $0x38] sm:$0xff]
        %v265 = vld [vmem:[%s219 + $0x40] sm:$0xff]
        %v266 = vld [vmem:[%s219 + $0x48] sm:$0xff]
        %v267 = vld [vmem:[%s219 + $0x50] sm:$0xff]
        %v268 = vld [vmem:[%s219 + $0x58] sm:$0xff]
        %v269 = vld [vmem:[%s219 + $0x60] sm:$0xff]
        %v270 = vld [vmem:[%s219 + $0x68] sm:$0xff]
        %v271 = vld [vmem:[%s219 + $0x70] sm:$0xff]
        %v272 = vld [vmem:[%s219 + $0x78] sm:$0xff]
        %v273 = vld [vmem:[%s219 + $0x80] sm:$0xff]
        %v274 = vld [vmem:[%s219 + $0x88] sm:$0xff]
        %v275 = vld [vmem:[%s219 + $0x90] sm:$0xff]
        %v276 = vld [vmem:[%s219 + $0x98] sm:$0xff]
        %v277 = vld [vmem:[%s219 + $0xa0] sm:$0xff]
        %v278 = vld [vmem:[%s219 + $0xa8] sm:$0xff]
        %v279 = vld [vmem:[%s219 + $0xb0] sm:$0xff]
        %v280 = vld [vmem:[%s219 + $0xb8] sm:$0xff]
        %v281 = vld [vmem:[%s219 + $0xc0] sm:$0xff]
        %v282 = vld [vmem:[%s219 + $0xc8] sm:$0xff]
        %v283 = vld [vmem:[%s219 + $0xd0] sm:$0xff]
        %v284 = vld [vmem:[%s219 + $0xd8] sm:$0xff]
        %v285 = vld [vmem:[%s219 + $0xe0] sm:$0xff]
        %v286 = vld [vmem:[%s219 + $0xe8] sm:$0xff]
        %v287 = vld [vmem:[%s219 + $0xf0] sm:$0xff]
        %v288 = vld [vmem:[%s219 + $0xf8] sm:$0xff]
        %v289 = vld [vmem:[%s219 + $0x100] sm:$0xff]
        %v290 = vld [vmem:[%s219 + $0x108] sm:$0xff]
        %v291 = vld [vmem:[%s219 + $0x110] sm:$0xff]
        %v292 = vld [vmem:[%s219 + $0x118] sm:$0xff]
        %v293 = vld [vmem:[%s219 + $0x120] sm:$0xff]
        %v294 = vld [vmem:[%s219 + $0x128] sm:$0xff]
        %v295 = vld [vmem:[%s219 + $0x130] sm:$0xff]
        %v296 = vld [vmem:[%s219 + $0x138] sm:$0xff]
        %v297 = vld [vmem:[%s219 + $0x140] sm:$0xff]
        %v298 = vld [vmem:[%s219 + $0x148] sm:$0xff]
        %v299 = vld [vmem:[%s219 + $0x150] sm:$0xff]
        %v300 = vld [vmem:[%s219 + $0x158] sm:$0xff]
        %v301 = vld [vmem:[%s219 + $0x160] sm:$0xff]
        %v302 = vld [vmem:[%s219 + $0x168] sm:$0xff]
        %v303 = vld [vmem:[%s219 + $0x170] sm:$0xff]
        %v304 = vld [vmem:[%s219 + $0x178] sm:$0xff]
        %v305 = vld [vmem:[%s219 + $0x180] sm:$0xff]
        %v306 = vld [vmem:[%s219 + $0x188] sm:$0xff]
        %v307 = vld [vmem:[%s219 + $0x190] sm:$0xff]
        %v308 = vld [vmem:[%s219 + $0x198] sm:$0xff]
        %v309 = vld [vmem:[%s219 + $0x1a0] sm:$0xff]
        %v310 = vld [vmem:[%s219 + $0x1a8] sm:$0xff]
        %v311 = vld [vmem:[%s219 + $0x1b0] sm:$0xff]
        %v312 = vld [vmem:[%s219 + $0x1b8] sm:$0xff]
        %v313 = vld [vmem:[%s219 + $0x1c0] sm:$0xff]
        %v314 = vld [vmem:[%s219 + $0x1c8] sm:$0xff]
        %v315 = vld [vmem:[%s219 + $0x1d0] sm:$0xff]
        %v316 = vld [vmem:[%s219 + $0x1d8] sm:$0xff]
        %v317 = vld [vmem:[%s219 + $0x1e0] sm:$0xff]
        %v318 = vld [vmem:[%s219 + $0x1e8] sm:$0xff]
        %v319 = vld [vmem:[%s219 + $0x1f0] sm:$0xff]
        %v320 = vld [vmem:[%s219 + $0x1f8] sm:$0xff]
        %v385 = vunpack.c.l.b16 %v257
        %v386 = vunpack.c.h.b16 %v257
        %v387 = vunpack.c.l.b16 %v258
        %v388 = vunpack.c.h.b16 %v258
        %v389 = vunpack.c.l.b16 %v259
        %v390 = vunpack.c.h.b16 %v259
        %v391 = vunpack.c.l.b16 %v260
        %v392 = vunpack.c.h.b16 %v260
        %v393 = vunpack.c.l.b16 %v261
        %v394 = vunpack.c.h.b16 %v261
        %v395 = vunpack.c.l.b16 %v262
        %v396 = vunpack.c.h.b16 %v262
        %v397 = vunpack.c.l.b16 %v263
        %v398 = vunpack.c.h.b16 %v263
        %v399 = vunpack.c.l.b16 %v264
        %v400 = vunpack.c.h.b16 %v264
        %v401 = vunpack.c.l.b16 %v265
        %v402 = vunpack.c.h.b16 %v265
        %v403 = vunpack.c.l.b16 %v266
        %v404 = vunpack.c.h.b16 %v266
        %v405 = vunpack.c.l.b16 %v267
        %v406 = vunpack.c.h.b16 %v267
        %v407 = vunpack.c.l.b16 %v268
        %v408 = vunpack.c.h.b16 %v268
        %v409 = vunpack.c.l.b16 %v269
        %v410 = vunpack.c.h.b16 %v269
        %v411 = vunpack.c.l.b16 %v270
        %v412 = vunpack.c.h.b16 %v270
        %v413 = vunpack.c.l.b16 %v271
        %v414 = vunpack.c.h.b16 %v271
        %v415 = vunpack.c.l.b16 %v272
        %v416 = vunpack.c.h.b16 %v272
        %v417 = vunpack.c.l.b16 %v273
        %v418 = vunpack.c.h.b16 %v273
        %v419 = vunpack.c.l.b16 %v274
        %v420 = vunpack.c.h.b16 %v274
        %v421 = vunpack.c.l.b16 %v275
        %v422 = vunpack.c.h.b16 %v275
        %v423 = vunpack.c.l.b16 %v276
        %v424 = vunpack.c.h.b16 %v276
        %v425 = vunpack.c.l.b16 %v277
        %v426 = vunpack.c.h.b16 %v277
        %v427 = vunpack.c.l.b16 %v278
        %v428 = vunpack.c.h.b16 %v278
        %v429 = vunpack.c.l.b16 %v279
        %v430 = vunpack.c.h.b16 %v279
        %v431 = vunpack.c.l.b16 %v280
        %v432 = vunpack.c.h.b16 %v280
        %v433 = vunpack.c.l.b16 %v281
        %v434 = vunpack.c.h.b16 %v281
        %v435 = vunpack.c.l.b16 %v282
        %v436 = vunpack.c.h.b16 %v282
        %v437 = vunpack.c.l.b16 %v283
        %v438 = vunpack.c.h.b16 %v283
        %v439 = vunpack.c.l.b16 %v284
        %v440 = vunpack.c.h.b16 %v284
        %v441 = vunpack.c.l.b16 %v285
        %v442 = vunpack.c.h.b16 %v285
        %v443 = vunpack.c.l.b16 %v286
        %v444 = vunpack.c.h.b16 %v286
        %v445 = vunpack.c.l.b16 %v287
        %v446 = vunpack.c.h.b16 %v287
        %v447 = vunpack.c.l.b16 %v288
        %v448 = vunpack.c.h.b16 %v288
        %v449 = vunpack.c.l.b16 %v289
        %v450 = vunpack.c.h.b16 %v289
        %v451 = vunpack.c.l.b16 %v290
        %v452 = vunpack.c.h.b16 %v290
        %v453 = vunpack.c.l.b16 %v291
        %v454 = vunpack.c.h.b16 %v291
        %v455 = vunpack.c.l.b16 %v292
        %v456 = vunpack.c.h.b16 %v292
        %v457 = vunpack.c.l.b16 %v293
        %v458 = vunpack.c.h.b16 %v293
        %v459 = vunpack.c.l.b16 %v294
        %v460 = vunpack.c.h.b16 %v294
        %v461 = vunpack.c.l.b16 %v295
        %v462 = vunpack.c.h.b16 %v295
        %v463 = vunpack.c.l.b16 %v296
        %v464 = vunpack.c.h.b16 %v296
        %v465 = vunpack.c.l.b16 %v297
        %v466 = vunpack.c.h.b16 %v297
        %v467 = vunpack.c.l.b16 %v298
        %v468 = vunpack.c.h.b16 %v298
        %v469 = vunpack.c.l.b16 %v299
        %v470 = vunpack.c.h.b16 %v299
        %v471 = vunpack.c.l.b16 %v300
        %v472 = vunpack.c.h.b16 %v300
        %v473 = vunpack.c.l.b16 %v301
        %v474 = vunpack.c.h.b16 %v301
        %v475 = vunpack.c.l.b16 %v302
        %v476 = vunpack.c.h.b16 %v302
        %v477 = vunpack.c.l.b16 %v303
        %v478 = vunpack.c.h.b16 %v303
        %v479 = vunpack.c.l.b16 %v304
        %v480 = vunpack.c.h.b16 %v304
        %v481 = vunpack.c.l.b16 %v305
        %v482 = vunpack.c.h.b16 %v305
        %v483 = vunpack.c.l.b16 %v306
        %v484 = vunpack.c.h.b16 %v306
        %v485 = vunpack.c.l.b16 %v307
        %v486 = vunpack.c.h.b16 %v307
        %v487 = vunpack.c.l.b16 %v308
        %v488 = vunpack.c.h.b16 %v308
        %v489 = vunpack.c.l.b16 %v309
        %v490 = vunpack.c.h.b16 %v309
        %v491 = vunpack.c.l.b16 %v310
        %v492 = vunpack.c.h.b16 %v310
        %v493 = vunpack.c.l.b16 %v311
        %v494 = vunpack.c.h.b16 %v311
        %v495 = vunpack.c.l.b16 %v312
        %v496 = vunpack.c.h.b16 %v312
        %v497 = vunpack.c.l.b16 %v313
        %v498 = vunpack.c.h.b16 %v313
        %v499 = vunpack.c.l.b16 %v314
        %v500 = vunpack.c.h.b16 %v314
        %v501 = vunpack.c.l.b16 %v315
        %v502 = vunpack.c.h.b16 %v315
        %v503 = vunpack.c.l.b16 %v316
        %v504 = vunpack.c.h.b16 %v316
        %v505 = vunpack.c.l.b16 %v317
        %v506 = vunpack.c.h.b16 %v317
        %v507 = vunpack.c.l.b16 %v318
        %v508 = vunpack.c.h.b16 %v318
        %v509 = vunpack.c.l.b16 %v319
        %v510 = vunpack.c.h.b16 %v319
        %v511 = vunpack.c.l.b16 %v320
        %v512 = vunpack.c.h.b16 %v320
        %v513 = vpack.c.b16 %v393, %v385
        %v514 = vpack.c.b16 %v394, %v386
        %v515 = vpack.c.b16 %v395, %v387
        %v516 = vpack.c.b16 %v396, %v388
        %v517 = vpack.c.b16 %v397, %v389
        %v518 = vpack.c.b16 %v398, %v390
        %v519 = vpack.c.b16 %v399, %v391
        %v520 = vpack.c.b16 %v400, %v392
        %v521 = vpack.c.b16 %v409, %v401
        %v522 = vpack.c.b16 %v410, %v402
        %v523 = vpack.c.b16 %v411, %v403
        %v524 = vpack.c.b16 %v412, %v404
        %v525 = vpack.c.b16 %v413, %v405
        %v526 = vpack.c.b16 %v414, %v406
        %v527 = vpack.c.b16 %v415, %v407
        %v528 = vpack.c.b16 %v416, %v408
        %v529 = vpack.c.b16 %v425, %v417
        %v530 = vpack.c.b16 %v426, %v418
        %v531 = vpack.c.b16 %v427, %v419
        %v532 = vpack.c.b16 %v428, %v420
        %v533 = vpack.c.b16 %v429, %v421
        %v534 = vpack.c.b16 %v430, %v422
        %v535 = vpack.c.b16 %v431, %v423
        %v536 = vpack.c.b16 %v432, %v424
        %v537 = vpack.c.b16 %v441, %v433
        %v538 = vpack.c.b16 %v442, %v434
        %v539 = vpack.c.b16 %v443, %v435
        %v540 = vpack.c.b16 %v444, %v436
        %v541 = vpack.c.b16 %v445, %v437
        %v542 = vpack.c.b16 %v446, %v438
        %v543 = vpack.c.b16 %v447, %v439
        %v544 = vpack.c.b16 %v448, %v440
        %v545 = vpack.c.b16 %v457, %v449
        %v546 = vpack.c.b16 %v458, %v450
        %v547 = vpack.c.b16 %v459, %v451
        %v548 = vpack.c.b16 %v460, %v452
        %v549 = vpack.c.b16 %v461, %v453
        %v550 = vpack.c.b16 %v462, %v454
        %v551 = vpack.c.b16 %v463, %v455
        %v552 = vpack.c.b16 %v464, %v456
        %v553 = vpack.c.b16 %v473, %v465
        %v554 = vpack.c.b16 %v474, %v466
        %v555 = vpack.c.b16 %v475, %v467
        %v556 = vpack.c.b16 %v476, %v468
        %v557 = vpack.c.b16 %v477, %v469
        %v558 = vpack.c.b16 %v478, %v470
        %v559 = vpack.c.b16 %v479, %v471
        %v560 = vpack.c.b16 %v480, %v472
        %v561 = vpack.c.b16 %v489, %v481
        %v562 = vpack.c.b16 %v490, %v482
        %v563 = vpack.c.b16 %v491, %v483
        %v564 = vpack.c.b16 %v492, %v484
        %v565 = vpack.c.b16 %v493, %v485
        %v566 = vpack.c.b16 %v494, %v486
        %v567 = vpack.c.b16 %v495, %v487
        %v568 = vpack.c.b16 %v496, %v488
        %v569 = vpack.c.b16 %v505, %v497
        %v570 = vpack.c.b16 %v506, %v498
        %v571 = vpack.c.b16 %v507, %v499
        %v572 = vpack.c.b16 %v508, %v500
        %v573 = vpack.c.b16 %v509, %v501
        %v574 = vpack.c.b16 %v510, %v502
        %v575 = vpack.c.b16 %v511, %v503
        %v576 = vpack.c.b16 %v512, %v504
        %641 = vmatprep.subr.bf16.mxu0 %v570
        %642 = vmatpush1.bf16.msra.mxu0 %v569
        %643 = vmatprep.subr.bf16.mxu0 %v562
        %644 = vmatpush1.bf16.msra.mxu0 %v561
        %645 = vmatprep.subr.bf16.mxu0 %v554
        %646 = vmatpush1.bf16.msra.mxu0 %v553
        %647 = vmatprep.subr.bf16.mxu0 %v546
        %648 = vmatpush1.bf16.msra.mxu0 %v545
        %649 = vmatprep.subr.bf16.mxu0 %v538
        %650 = vmatpush1.bf16.msra.mxu0 %v537
        %651 = vmatprep.subr.bf16.mxu0 %v530
        %652 = vmatpush1.bf16.msra.mxu0 %v529
        %653 = vmatprep.subr.bf16.mxu0 %v522
        %654 = vmatpush1.bf16.msra.mxu0 %v521
        %655 = vmatprep.subr.bf16.mxu0 %v514
        %656 = vmatpush1.bf16.msra.mxu0 %v513
        %657 = vmatprep.subr.bf16.mxu0 0
        %658 = vmatpush2.bf16.msra.mxu0 0
        %659 = vmatprep.subr.bf16.mxu0 0
        %660 = vmatpush2.bf16.msra.mxu0 0
        %661 = vmatprep.subr.bf16.mxu0 0
        %662 = vmatpush2.bf16.msra.mxu0 0
        %663 = vmatprep.subr.bf16.mxu0 0
        %664 = vmatpush2.bf16.msra.mxu0 0
        %665 = vmatprep.subr.bf16.mxu0 0
        %666 = vmatpush2.bf16.msra.mxu0 0
        %667 = vmatprep.subr.bf16.mxu0 0
        %668 = vmatpush2.bf16.msra.mxu0 0
        %669 = vmatprep.subr.bf16.mxu0 0
        %670 = vmatpush2.bf16.msra.mxu0 0
        %671 = vmatprep.subr.bf16.mxu0 0
        %672 = vmatpush2.bf16.msra.mxu0 0
        %673 = vmatprep.mubr.bf16.mxu0 0
        %674 = vmatmul.mubr.bf16.gmra.mxu0 %v256
        %v675 = vpop.f32.mrf.mxu0
        %v676 = vadd.f32 0.0, %v675
        %v677 = vpop.f32.mrf.mxu0
        %v678 = vadd.f32 0.0, %v677
        %v679 = vpop.f32.mrf.mxu0
        %v680 = vadd.f32 0.0, %v679
        %v681 = vpop.f32.mrf.mxu0
        %v682 = vadd.f32 0.0, %v681
        %683 = vdwg.mxu0
        %684 = vmatprep.subr.bf16.mxu0 %v572
        %685 = vmatpush1.bf16.msra.mxu0 %v571
        %686 = vmatprep.subr.bf16.mxu0 %v564
        %687 = vmatpush1.bf16.msra.mxu0 %v563
        %688 = vmatprep.subr.bf16.mxu0 %v556
        %689 = vmatpush1.bf16.msra.mxu0 %v555
        %690 = vmatprep.subr.bf16.mxu0 %v548
        %691 = vmatpush1.bf16.msra.mxu0 %v547
        %692 = vmatprep.subr.bf16.mxu0 %v540
        %693 = vmatpush1.bf16.msra.mxu0 %v539
        %694 = vmatprep.subr.bf16.mxu0 %v532
        %695 = vmatpush1.bf16.msra.mxu0 %v531
        %696 = vmatprep.subr.bf16.mxu0 %v524
        %697 = vmatpush1.bf16.msra.mxu0 %v523
        %698 = vmatprep.subr.bf16.mxu0 %v516
        %699 = vmatpush1.bf16.msra.mxu0 %v515
        %700 = vmatprep.subr.bf16.mxu0 0
        %701 = vmatpush2.bf16.msra.mxu0 0
        %702 = vmatprep.subr.bf16.mxu0 0
        %703 = vmatpush2.bf16.msra.mxu0 0
        %704 = vmatprep.subr.bf16.mxu0 0
        %705 = vmatpush2.bf16.msra.mxu0 0
        %706 = vmatprep.subr.bf16.mxu0 0
        %707 = vmatpush2.bf16.msra.mxu0 0
        %708 = vmatprep.subr.bf16.mxu0 0
        %709 = vmatpush2.bf16.msra.mxu0 0
        %710 = vmatprep.subr.bf16.mxu0 0
        %711 = vmatpush2.bf16.msra.mxu0 0
        %712 = vmatprep.subr.bf16.mxu0 0
        %713 = vmatpush2.bf16.msra.mxu0 0
        %714 = vmatprep.subr.bf16.mxu0 0
        %715 = vmatpush2.bf16.msra.mxu0 0
        %716 = vmatprep.mubr.bf16.mxu0 0
        %717 = vmatmul.mubr.bf16.gmra.mxu0 %v256
        %v718 = vpop.f32.mrf.mxu0
        %v719 = vadd.f32 0.0, %v718
        %v720 = vpop.f32.mrf.mxu0
        %v721 = vadd.f32 0.0, %v720
        %v722 = vpop.f32.mrf.mxu0
        %v723 = vadd.f32 0.0, %v722
        %v724 = vpop.f32.mrf.mxu0
        %v725 = vadd.f32 0.0, %v724
        %726 = vdwg.mxu0
        %727 = vmatprep.subr.bf16.mxu0 %v574
        %728 = vmatpush1.bf16.msra.mxu0 %v573
        %729 = vmatprep.subr.bf16.mxu0 %v566
        %730 = vmatpush1.bf16.msra.mxu0 %v565
        %731 = vmatprep.subr.bf16.mxu0 %v558
        %732 = vmatpush1.bf16.msra.mxu0 %v557
        %733 = vmatprep.subr.bf16.mxu0 %v550
        %734 = vmatpush1.bf16.msra.mxu0 %v549
        %735 = vmatprep.subr.bf16.mxu0 %v542
        %736 = vmatpush1.bf16.msra.mxu0 %v541
        %737 = vmatprep.subr.bf16.mxu0 %v534
        %738 = vmatpush1.bf16.msra.mxu0 %v533
        %739 = vmatprep.subr.bf16.mxu0 %v526
        %740 = vmatpush1.bf16.msra.mxu0 %v525
        %741 = vmatprep.subr.bf16.mxu0 %v518
        %742 = vmatpush1.bf16.msra.mxu0 %v517
        %743 = vmatprep.subr.bf16.mxu0 0
        %744 = vmatpush2.bf16.msra.mxu0 0
        %745 = vmatprep.subr.bf16.mxu0 0
        %746 = vmatpush2.bf16.msra.mxu0 0
        %747 = vmatprep.subr.bf16.mxu0 0
        %748 = vmatpush2.bf16.msra.mxu0 0
        %749 = vmatprep.subr.bf16.mxu0 0
        %750 = vmatpush2.bf16.msra.mxu0 0
        %751 = vmatprep.subr.bf16.mxu0 0
        %752 = vmatpush2.bf16.msra.mxu0 0
        %753 = vmatprep.subr.bf16.mxu0 0
        %754 = vmatpush2.bf16.msra.mxu0 0
        %755 = vmatprep.subr.bf16.mxu0 0
        %756 = vmatpush2.bf16.msra.mxu0 0
        %757 = vmatprep.subr.bf16.mxu0 0
        %758 = vmatpush2.bf16.msra.mxu0 0
        %759 = vmatprep.mubr.bf16.mxu0 0
        %760 = vmatmul.mubr.bf16.gmra.mxu0 %v256
        %v761 = vpop.f32.mrf.mxu0
        %v762 = vadd.f32 0.0, %v761
        %v763 = vpop.f32.mrf.mxu0
        %v764 = vadd.f32 0.0, %v763
        %v765 = vpop.f32.mrf.mxu0
        %v766 = vadd.f32 0.0, %v765
        %v767 = vpop.f32.mrf.mxu0
        %v768 = vadd.f32 0.0, %v767
        %769 = vdwg.mxu0
        %770 = vmatprep.subr.bf16.mxu0 %v576
        %771 = vmatpush1.bf16.msra.mxu0 %v575
        %772 = vmatprep.subr.bf16.mxu0 %v568
        %773 = vmatpush1.bf16.msra.mxu0 %v567
        %774 = vmatprep.subr.bf16.mxu0 %v560
        %775 = vmatpush1.bf16.msra.mxu0 %v559
        %776 = vmatprep.subr.bf16.mxu0 %v552
        %777 = vmatpush1.bf16.msra.mxu0 %v551
        %778 = vmatprep.subr.bf16.mxu0 %v544
        %779 = vmatpush1.bf16.msra.mxu0 %v543
        %780 = vmatprep.subr.bf16.mxu0 %v536
        %781 = vmatpush1.bf16.msra.mxu0 %v535
        %782 = vmatprep.subr.bf16.mxu0 %v528
        %783 = vmatpush1.bf16.msra.mxu0 %v527
        %784 = vmatprep.subr.bf16.mxu0 %v520
        %785 = vmatpush1.bf16.msra.mxu0 %v519
        %786 = vmatprep.subr.bf16.mxu0 0
        %787 = vmatpush2.bf16.msra.mxu0 0
        %788 = vmatprep.subr.bf16.mxu0 0
        %789 = vmatpush2.bf16.msra.mxu0 0
        %790 = vmatprep.subr.bf16.mxu0 0
        %791 = vmatpush2.bf16.msra.mxu0 0
        %792 = vmatprep.subr.bf16.mxu0 0
        %793 = vmatpush2.bf16.msra.mxu0 0
        %794 = vmatprep.subr.bf16.mxu0 0
        %795 = vmatpush2.bf16.msra.mxu0 0
        %796 = vmatprep.subr.bf16.mxu0 0
        %797 = vmatpush2.bf16.msra.mxu0 0
        %798 = vmatprep.subr.bf16.mxu0 0
        %799 = vmatpush2.bf16.msra.mxu0 0
        %800 = vmatprep.subr.bf16.mxu0 0
        %801 = vmatpush2.bf16.msra.mxu0 0
        %802 = vmatprep.mubr.bf16.mxu0 0
        %803 = vmatmul.mubr.bf16.gmra.mxu0 %v256
        %v804 = vpop.f32.mrf.mxu0
        %v805 = vadd.f32 0.0, %v804
        %v806 = vpop.f32.mrf.mxu0
        %v807 = vadd.f32 0.0, %v806
        %v808 = vpop.f32.mrf.mxu0
        %v809 = vadd.f32 0.0, %v808
        %v810 = vpop.f32.mrf.mxu0
        %v811 = vadd.f32 0.0, %v810
        %812 = vdwg.mxu0
        %v813 = vpack.c.bf16 %v680, %v676
        %v814 = vpack.c.bf16 %v682, %v678
        %v815 = vpack.c.bf16 %v723, %v719
        %v816 = vpack.c.bf16 %v725, %v721
        %v817 = vpack.c.bf16 %v766, %v762
        %v818 = vpack.c.bf16 %v768, %v764
        %v819 = vpack.c.bf16 %v809, %v805
        %v820 = vpack.c.bf16 %v811, %v807
        %v821 = vld [vmem:[#allocation3] sm:$0xf]
        %v822 = vld [vmem:[#allocation3 + $0x4] sm:$0xf]
        %v823 = vld [vmem:[%s244] sm:$0x1]
        %v825 = vlaneseq
        %v826 = vshrl.u32 %v825, 7
        %v827 = vsub.s32 0, %v826
        %v828 = vrot.slane %v823, %v827
        %v832 = vunpack.c.l.b16 %v821
        %v833 = vunpack.c.l.b16 %v822
        %v834 = vpack.c.b16 %v833, %v832
        %836 = vmatprep.subr.bf16.mxu0 0
        %837 = vmatpush1.bf16.msra.mxu0 %v820
        %838 = vmatprep.subr.bf16.mxu0 0
        %839 = vmatpush1.bf16.msra.mxu0 %v819
        %840 = vmatprep.subr.bf16.mxu0 0
        %841 = vmatpush1.bf16.msra.mxu0 %v818
        %842 = vmatprep.subr.bf16.mxu0 0
        %843 = vmatpush1.bf16.msra.mxu0 %v817
        %844 = vmatprep.subr.bf16.mxu0 0
        %845 = vmatpush1.bf16.msra.mxu0 %v816
        %846 = vmatprep.subr.bf16.mxu0 0
        %847 = vmatpush1.bf16.msra.mxu0 %v815
        %848 = vmatprep.subr.bf16.mxu0 0
        %849 = vmatpush1.bf16.msra.mxu0 %v814
        %850 = vmatprep.subr.bf16.mxu0 0
        %851 = vmatpush1.bf16.msra.mxu0 %v813
        %852 = vmatprep.subr.bf16.mxu0 0
        %853 = vmatpush2.bf16.msra.mxu0 0
        %854 = vmatprep.subr.bf16.mxu0 0
        %855 = vmatpush2.bf16.msra.mxu0 0
        %856 = vmatprep.subr.bf16.mxu0 0
        %857 = vmatpush2.bf16.msra.mxu0 0
        %858 = vmatprep.subr.bf16.mxu0 0
        %859 = vmatpush2.bf16.msra.mxu0 0
        %860 = vmatprep.subr.bf16.mxu0 0
        %861 = vmatpush2.bf16.msra.mxu0 0
        %862 = vmatprep.subr.bf16.mxu0 0
        %863 = vmatpush2.bf16.msra.mxu0 0
        %864 = vmatprep.subr.bf16.mxu0 0
        %865 = vmatpush2.bf16.msra.mxu0 0
        %866 = vmatprep.subr.bf16.mxu0 0
        %867 = vmatpush2.bf16.msra.mxu0 0
        %868 = vmatprep.mubr.bf16.mxu0 0
        %869 = vmatmul.mubr.bf16.gmra.mxu0 %v834
        %v870 = vpop.f32.mrf.mxu0
        %v871 = vadd.f32 %v828, %v870
        %v872 = vpop.f32.mrf.mxu0
        %v873 = vpop.f32.mrf.mxu0
        %v874 = vadd.f32 %v828, %v873
        %v875 = vpop.f32.mrf.mxu0
        %876 = vdwg.mxu0
        %v877 = vmax.f32 %v871, 0.0
        %v878 = vmax.f32 %v874, 0.0
        %879 = vst [vmem:[#allocation2] sm:$0xff] %v877
        %880 = vst [vmem:[#allocation2 + $0x8] sm:$0xff] %v878
        %p881 = scmp.eq.s32.totalorder %s18, 2
        // Predicated region
        $region53: #{tpu_custom_call.1} parent=35 // pred_check
          %p882 = pneg %p881
        $region54: #{tpu_custom_call.1} parent=35 // pred_check_branch
          %884 = sbr.rel (%p882) target = $region56
        $region55: #{tpu_custom_call.1} parent=35 // pred_region
          %885 = vst [vmem:[#allocation9] sm:$0xff] %v877
          %886 = vst [vmem:[#allocation9 + $0x8] sm:$0xff] %v878
        $region56: #{tpu_custom_call.1} parent=35 // pred_fallthru
          _
        // Predicated region
        $region57: #{tpu_custom_call.1} parent=35 // pred_check
          %p887 = pneg %p125
        $region58: #{tpu_custom_call.1} parent=35 // pred_check_branch
          %889 = sbr.rel (%p887) target = $region60
        $region59: #{tpu_custom_call.1} parent=35 // pred_region
          %s891 = ssub.s32 256, 256
          %892 = vsyncadd [#allocation5], %s891
          %s893 = sshll.u32 [#allocation9], 4
          %s894 = int_to_ptr.vmem [resolvable:$true] %s893
          %899 = dma.vmem_to_hbm [thread:$0]  %s894, 256, %s4, [#allocation5], 128, 128, 8
        $region60: #{tpu_custom_call.1} parent=35 // pred_fallthru
          _
        // Predicated region
        $region61: #{tpu_custom_call.1} parent=35 // pred_check
          %p900 = pneg %p125
        $region62: #{tpu_custom_call.1} parent=35 // pred_check_branch
          %902 = sbr.rel (%p900) target = $region64
        $region63: #{tpu_custom_call.1} parent=35 // pred_region
          %903 = dma.done [#allocation5], 256
        $region64: #{tpu_custom_call.1} parent=35 // pred_fallthru
          _
      $region36: #{tpu_custom_call.1} parent=5 // pred_fallthru
        _
      %p904 = scmp.le.s32.totalorder 2, %s13
      // Predicated region
      $region65: #{tpu_custom_call.1} parent=5 // pred_check
        %p905 = pneg %p904
      $region66: #{tpu_custom_call.1} parent=5 // pred_check_branch
        %907 = sbr.rel (%p905) target = $region68
      $region67: #{tpu_custom_call.1} parent=5 // pred_region
        %s908 = ssub.s32 %s13, 2
      $region68: #{tpu_custom_call.1} parent=5 // pred_fallthru
        _
    $region6: #{tpu_custom_call.1} parent=1 // loop_footer
      %s17 = sadd.s32 1, %s13
    $region7: #{tpu_custom_call.1} parent=1 // loop_footer_branch
      %12 = sbr.rel target = $region3
    $region8: #{tpu_custom_call.1} parent=1 // loop_exit
      _
    %909 = vsyncpa [#allocation4], 1
    %s910 = scalar_lea.sflag [#allocation4], 1
    %911 = vsyncpa %s910, 1
    %912 = vsyncpa [#allocation7], 1
    %913 = vsyncpa [#allocation5], 1
    %s914 = scalar_lea.sflag [#allocation5], 1
    %915 = vsyncpa %s914, 1

</llo_original>
